<compile_context>
chip_gen: v5e
topology: v5e:2x2
jax: 0.10.0
libtpu: 0.0.40
codegen_flags: <defaults>
</compile_context>

<pallas_src>
import jax
import jax.numpy as jnp
from jax import lax
from jax.experimental import pallas as pl
from jax.experimental.pallas import tpu as pltpu


def _fuse_gate_cols(wf, wb, H):
    """Interleave per-direction gate columns.

    Inputs have PyTorch gate order [i, f, g, o] along the last axis (4H each).
    Output is 8H wide with layout
        [i_f i_b | f_f f_b | o_f o_b | g_f g_b]
    so sigmoid gates occupy the contiguous first 6H lanes, tanh the last 2H,
    and every 2H gate block matches the fused (N, 2H) state layout [fwd | bwd].
    """
    def blk(w, k):
        return w[..., k * H:(k + 1) * H]
    return jnp.concatenate(
        [blk(wf, 0), blk(wb, 0),    # i
         blk(wf, 1), blk(wb, 1),    # f
         blk(wf, 3), blk(wb, 3),    # o
         blk(wf, 2), blk(wb, 2)],   # g
        axis=-1)


def _bilstm_recurrence_kernel(gates_in_ref, whh_ref, out_ref, h_sc, c_sc):
    """Fused bidirectional LSTM recurrence.

    gates_in_ref : (T, N, 8H) f32 -- precomputed x@W_ih + b for both directions
                   in the fused gate layout; row s holds the forward projection
                   for time s and the backward projection for time T-1-s.
    whh_ref      : (2H, 8H) f32 -- block-diagonal recurrent weights, fused layout.
    out_ref      : (T, N, 2H)   -- row s: [:, :H] = fwd hidden at time s,
                   [:, H:] = bwd hidden at time T-1-s (un-reversed in wrapper).
    h_sc, c_sc   : (N, 2H) f32 scratch: [:, :H] forward / [:, H:] backward state.
    """
    T = gates_in_ref.shape[0]
    H2 = out_ref.shape[-1]          # 2H

    h_sc[...] = jnp.zeros_like(h_sc)
    c_sc[...] = jnp.zeros_like(c_sc)

    whh = whh_ref[...]              # loop invariant: load once

    def step(s, carry):
        h = h_sc[...]
        c = c_sc[...]
        gates = gates_in_ref[s] + jnp.dot(
            h, whh, preferred_element_type=jnp.float32)          # (N, 8H)
        sig = jax.nn.sigmoid(gates[:, 0:3 * H2])                  # i | f | o
        g = jnp.tanh(gates[:, 3 * H2:4 * H2])
        i = sig[:, 0:H2]
        f = sig[:, H2:2 * H2]
        o = sig[:, 2 * H2:3 * H2]
        c_new = f * c + i * g
        h_new = o * jnp.tanh(c_new)
        h_sc[...] = h_new
        c_sc[...] = c_new
        out_ref[s] = h_new.astype(out_ref.dtype)
        return carry

    lax.fori_loop(0, T, step, 0, unroll=True)


def modeling_layer_forward(x, params, seq_context_lens=None):
    """x: (N, T, 8H) float32 -> (N, T, 2H) float32 (PyTorch BiLSTM output)."""
    # seq_context_lens is unused by the reference forward.
    N, T, D = x.shape
    H = params["whh_f"].shape[0]
    H2 = 2 * H

    # ---- input projection for both directions: ONE batched matmul (XLA) ----
    x_tm = jnp.transpose(x, (1, 0, 2))                                   # (T, N, 8H)
    w_ih = jnp.concatenate([params["wih_f"], params["wih_b"]], axis=1)   # (8H, 8H)
    b = jnp.concatenate([params["b_f"], params["b_b"]], axis=1)          # (1, 8H)
    gi = x_tm.reshape(T * N, D) @ w_ih + b                               # (T*N, 8H)
    gi = gi.reshape(T, N, 8 * H)
    gi_f = gi[:, :, :4 * H]                  # forward projection, time s
    gi_b = gi[::-1, :, 4 * H:]               # backward projection, time T-1-s
    gates_in = _fuse_gate_cols(gi_f, gi_b, H)                            # (T, N, 8H)

    # ---- fused block-diagonal recurrent weights (built once, outside kernel) ----
    zeros = jnp.zeros_like(params["whh_f"])
    whh_f_pad = jnp.concatenate([params["whh_f"], zeros], axis=0)        # (2H, 4H)
    whh_b_pad = jnp.concatenate([zeros, params["whh_b"]], axis=0)        # (2H, 4H)
    whh_fused = _fuse_gate_cols(whh_f_pad, whh_b_pad, H)                 # (2H, 8H)

    vmem = pl.BlockSpec(memory_space=pltpu.MemorySpace.VMEM)
    cost = pl.CostEstimate(
        flops=2 * T * N * H2 * 8 * H + 8 * T * N * H2,
        transcendentals=T * N * 10 * H,
        bytes_accessed=4 * (T * N * 8 * H + 2 * H * 8 * H + T * N * H2),
    )
    out_tm = pl.pallas_call(
        _bilstm_recurrence_kernel,
        out_shape=jax.ShapeDtypeStruct((T, N, H2), x.dtype),
        in_specs=[vmem, vmem],
        out_specs=vmem,
        scratch_shapes=[pltpu.VMEM((N, H2), jnp.float32),
                        pltpu.VMEM((N, H2), jnp.float32)],
        cost_estimate=cost,
    )(gates_in, whh_fused)

    fwd = out_tm[:, :, :H]           # index s -> fwd hidden at time s
    bwd = out_tm[::-1, :, H:]        # re-reverse: index t -> bwd hidden at time t
    out = jnp.concatenate([fwd, bwd], axis=-1)                           # (T, N, 2H)
    return jnp.transpose(out, (1, 0, 2))                                 # (N, T, 2H)


def init_params(key, h_dim):
    """Deterministic synthetic BiLSTM parameters (PyTorch-shaped, pre-transposed)."""
    in_dim = 8 * h_dim
    ks = jax.random.split(key, 8)
    scale = 1.0 / jnp.sqrt(h_dim)

    def u(k, shape):
        return jax.random.uniform(k, shape, jnp.float32, -scale, scale)

    # PyTorch: weight_ih (4H, in), weight_hh (4H, H); store transposed for x @ W.
    params = {
        "wih_f": u(ks[0], (in_dim, 4 * h_dim)),
        "whh_f": u(ks[1], (h_dim, 4 * h_dim)),
        "b_f":   (u(ks[2], (1, 4 * h_dim)) + u(ks[3], (1, 4 * h_dim))),  # b_ih + b_hh
        "wih_b": u(ks[4], (in_dim, 4 * h_dim)),
        "whh_b": u(ks[5], (h_dim, 4 * h_dim)),
        "b_b":   (u(ks[6], (1, 4 * h_dim)) + u(ks[7], (1, 4 * h_dim))),
    }
    return params


def _reference_bilstm(x, params):
    """Pure-JAX lax.scan reference (PyTorch gate order) for validation."""
    N, T, _ = x.shape
    H = params["whh_f"].shape[0]

    def make_step(wih, whh, b):
        def step(carry, x_t):
            h, c = carry
            gates = x_t @ wih + h @ whh + b
            i = jax.nn.sigmoid(gates[:, 0 * H:1 * H])
            f = jax.nn.sigmoid(gates[:, 1 * H:2 * H])
            g = jnp.tanh(gates[:, 2 * H:3 * H])
            o = jax.nn.sigmoid(gates[:, 3 * H:4 * H])
            c = f * c + i * g
            h = o * jnp.tanh(c)
            return (h, c), h
        return step

    h0 = jnp.zeros((N, H), jnp.float32)
    c0 = jnp.zeros((N, H), jnp.float32)
    x_tm = jnp.transpose(x, (1, 0, 2))

    _, fwd = lax.scan(make_step(params["wih_f"], params["whh_f"], params["b_f"]),
                      (h0, c0), x_tm)
    _, bwd = lax.scan(make_step(params["wih_b"], params["whh_b"], params["b_b"]),
                      (h0, c0), x_tm[::-1])
    bwd = bwd[::-1]
    out_tm = jnp.concatenate([fwd, bwd], axis=-1)
    return jnp.transpose(out_tm, (1, 0, 2))


if __name__ == "__main__":
    # config: LSTM_HIDDEN_DIM = 32, so input feature dim = 8 * 32 = 256
    N, T, H = 2, 8, 32
    key = jax.random.PRNGKey(0)
    k_x, k_p = jax.random.split(key)

    x = jax.random.normal(k_x, (N, T, 8 * H), jnp.float32)
    seq_context_lens = jnp.full((N,), T, jnp.int32)  # unused by the reference forward
    params = init_params(k_p, H)

    forward = jax.jit(modeling_layer_forward)
    out = forward(x, params, seq_context_lens)
    out = jax.block_until_ready(out)

    ref = _reference_bilstm(x, params)
    assert out.shape == (N, T, 2 * H)
    assert jnp.allclose(out, ref, atol=1e-4, rtol=1e-4)

    print("KERNEL_OK")
</pallas_src>

<mosaic_0001>
module attributes {stable_mosaic.version = 11 : i64} {
  func.func @_bilstm_recurrence_kernel(%arg0: memref<8x2x256xf32, #tpu.memory_space<vmem>>, %arg1: memref<64x256xf32, #tpu.memory_space<vmem>>, %arg2: memref<8x2x64xf32, #tpu.memory_space<vmem>>, %arg3: memref<2x64xf32, #tpu.memory_space<vmem>>, %arg4: memref<2x64xf32, #tpu.memory_space<vmem>>) attributes {dimension_semantics = [], scalar_prefetch = 0 : i64, scratch_operands = 2 : i64, tpu.core_type = #tpu.core_type<tc>} {
    %cst = arith.constant 0.000000e+00 : f32
    %0 = vector.broadcast %cst : f32 to vector<2x64xf32>
    %c0 = arith.constant 0 : index
    %c0_0 = arith.constant 0 : index
    %1 = vector.load %arg3[%c0, %c0_0] : memref<2x64xf32, #tpu.memory_space<vmem>>, vector<2x64xf32>
    tpu.vector_store %arg3[%c0, %c0_0], %0 {strides = array<i32>} : memref<2x64xf32, #tpu.memory_space<vmem>>, vector<2x64xf32>,
    %cst_1 = arith.constant 0.000000e+00 : f32
    %2 = vector.broadcast %cst_1 : f32 to vector<2x64xf32>
    %c0_2 = arith.constant 0 : index
    %c0_3 = arith.constant 0 : index
    %3 = vector.load %arg4[%c0_2, %c0_3] : memref<2x64xf32, #tpu.memory_space<vmem>>, vector<2x64xf32>
    tpu.vector_store %arg4[%c0_2, %c0_3], %2 {strides = array<i32>} : memref<2x64xf32, #tpu.memory_space<vmem>>, vector<2x64xf32>,
    %c0_4 = arith.constant 0 : index
    %c0_5 = arith.constant 0 : index
    %4 = vector.load %arg1[%c0_4, %c0_5] : memref<64x256xf32, #tpu.memory_space<vmem>>, vector<64x256xf32>
    %c0_i32 = arith.constant 0 : i32
    %c0_6 = arith.constant 0 : index
    %c0_7 = arith.constant 0 : index
    %5 = vector.load %arg3[%c0_6, %c0_7] : memref<2x64xf32, #tpu.memory_space<vmem>>, vector<2x64xf32>
    %c0_8 = arith.constant 0 : index
    %c0_9 = arith.constant 0 : index
    %6 = vector.load %arg4[%c0_8, %c0_9] : memref<2x64xf32, #tpu.memory_space<vmem>>, vector<2x64xf32>
    %7 = arith.index_cast %c0_i32 : i32 to index
    %c0_10 = arith.constant 0 : index
    %c0_11 = arith.constant 0 : index
    %8 = vector.load %arg0[%7, %c0_10, %c0_11] : memref<8x2x256xf32, #tpu.memory_space<vmem>>, vector<1x2x256xf32>
    %9 = vector.shape_cast %8 : vector<1x2x256xf32> to vector<2x256xf32>
    %cst_12 = arith.constant dense<0.000000e+00> : vector<2x256xf32>
    %10 = tpu.matmul %5, %4, %cst_12 {dimension_numbers = #tpu.dot_dimension_numbers<[1], [0], [0], [1], [0, 0, 1, 1], [], []>} : vector<2x64xf32>, vector<64x256xf32>, vector<2x256xf32> -> vector<2x256xf32>
    %11 = arith.addf %9, %10 : vector<2x256xf32>
    %12 = vector.extract_strided_slice %11 {offsets = [0, 0], sizes = [2, 192], strides = [1, 1]} : vector<2x256xf32> to vector<2x192xf32>
    %13 = arith.negf %12 : vector<2x192xf32>
    %14 = math.exp %13 : vector<2x192xf32>
    %cst_13 = arith.constant 1.000000e+00 : f32
    %15 = vector.broadcast %cst_13 : f32 to vector<2x192xf32>
    %16 = arith.addf %15, %14 : vector<2x192xf32>
    %17 = arith.divf %15, %16 : vector<2x192xf32>
    %18 = vector.extract_strided_slice %11 {offsets = [0, 192], sizes = [2, 64], strides = [1, 1]} : vector<2x256xf32> to vector<2x64xf32>
    %19 = math.tanh %18 : vector<2x64xf32>
    %20 = vector.extract_strided_slice %17 {offsets = [0, 0], sizes = [2, 64], strides = [1, 1]} : vector<2x192xf32> to vector<2x64xf32>
    %21 = vector.extract_strided_slice %17 {offsets = [0, 64], sizes = [2, 64], strides = [1, 1]} : vector<2x192xf32> to vector<2x64xf32>
    %22 = vector.extract_strided_slice %17 {offsets = [0, 128], sizes = [2, 64], strides = [1, 1]} : vector<2x192xf32> to vector<2x64xf32>
    %23 = arith.mulf %21, %6 : vector<2x64xf32>
    %24 = arith.mulf %20, %19 : vector<2x64xf32>
    %25 = arith.addf %23, %24 : vector<2x64xf32>
    %26 = math.tanh %25 : vector<2x64xf32>
    %27 = arith.mulf %22, %26 : vector<2x64xf32>
    %c0_14 = arith.constant 0 : index
    %c0_15 = arith.constant 0 : index
    %28 = vector.load %arg3[%c0_14, %c0_15] : memref<2x64xf32, #tpu.memory_space<vmem>>, vector<2x64xf32>
    tpu.vector_store %arg3[%c0_14, %c0_15], %27 {strides = array<i32>} : memref<2x64xf32, #tpu.memory_space<vmem>>, vector<2x64xf32>,
    %c0_16 = arith.constant 0 : index
    %c0_17 = arith.constant 0 : index
    %29 = vector.load %arg4[%c0_16, %c0_17] : memref<2x64xf32, #tpu.memory_space<vmem>>, vector<2x64xf32>
    tpu.vector_store %arg4[%c0_16, %c0_17], %25 {strides = array<i32>} : memref<2x64xf32, #tpu.memory_space<vmem>>, vector<2x64xf32>,
    %30 = arith.index_cast %c0_i32 : i32 to index
    %c0_18 = arith.constant 0 : index
    %c0_19 = arith.constant 0 : index
    %31 = vector.load %arg2[%30, %c0_18, %c0_19] : memref<8x2x64xf32, #tpu.memory_space<vmem>>, vector<1x2x64xf32>
    %32 = vector.shape_cast %31 : vector<1x2x64xf32> to vector<2x64xf32>
    %33 = vector.shape_cast %27 : vector<2x64xf32> to vector<1x2x64xf32>
    tpu.vector_store %arg2[%30, %c0_18, %c0_19], %33 {strides = array<i32>} : memref<8x2x64xf32, #tpu.memory_space<vmem>>, vector<1x2x64xf32>,
    %c1_i32 = arith.constant 1 : i32
    %c0_20 = arith.constant 0 : index
    %c0_21 = arith.constant 0 : index
    %34 = vector.load %arg3[%c0_20, %c0_21] : memref<2x64xf32, #tpu.memory_space<vmem>>, vector<2x64xf32>
    %c0_22 = arith.constant 0 : index
    %c0_23 = arith.constant 0 : index
    %35 = vector.load %arg4[%c0_22, %c0_23] : memref<2x64xf32, #tpu.memory_space<vmem>>, vector<2x64xf32>
    %36 = arith.index_cast %c1_i32 : i32 to index
    %c0_24 = arith.constant 0 : index
    %c0_25 = arith.constant 0 : index
    %37 = vector.load %arg0[%36, %c0_24, %c0_25] : memref<8x2x256xf32, #tpu.memory_space<vmem>>, vector<1x2x256xf32>
    %38 = vector.shape_cast %37 : vector<1x2x256xf32> to vector<2x256xf32>
    %cst_26 = arith.constant dense<0.000000e+00> : vector<2x256xf32>
    %39 = tpu.matmul %34, %4, %cst_26 {dimension_numbers = #tpu.dot_dimension_numbers<[1], [0], [0], [1], [0, 0, 1, 1], [], []>} : vector<2x64xf32>, vector<64x256xf32>, vector<2x256xf32> -> vector<2x256xf32>
    %40 = arith.addf %38, %39 : vector<2x256xf32>
    %41 = vector.extract_strided_slice %40 {offsets = [0, 0], sizes = [2, 192], strides = [1, 1]} : vector<2x256xf32> to vector<2x192xf32>
    %42 = arith.negf %41 : vector<2x192xf32>
    %43 = math.exp %42 : vector<2x192xf32>
    %cst_27 = arith.constant 1.000000e+00 : f32
    %44 = vector.broadcast %cst_27 : f32 to vector<2x192xf32>
    %45 = arith.addf %44, %43 : vector<2x192xf32>
    %46 = arith.divf %44, %45 : vector<2x192xf32>
    %47 = vector.extract_strided_slice %40 {offsets = [0, 192], sizes = [2, 64], strides = [1, 1]} : vector<2x256xf32> to vector<2x64xf32>
    %48 = math.tanh %47 : vector<2x64xf32>
    %49 = vector.extract_strided_slice %46 {offsets = [0, 0], sizes = [2, 64], strides = [1, 1]} : vector<2x192xf32> to vector<2x64xf32>
    %50 = vector.extract_strided_slice %46 {offsets = [0, 64], sizes = [2, 64], strides = [1, 1]} : vector<2x192xf32> to vector<2x64xf32>
    %51 = vector.extract_strided_slice %46 {offsets = [0, 128], sizes = [2, 64], strides = [1, 1]} : vector<2x192xf32> to vector<2x64xf32>
    %52 = arith.mulf %50, %35 : vector<2x64xf32>
    %53 = arith.mulf %49, %48 : vector<2x64xf32>
    %54 = arith.addf %52, %53 : vector<2x64xf32>
    %55 = math.tanh %54 : vector<2x64xf32>
    %56 = arith.mulf %51, %55 : vector<2x64xf32>
    %c0_28 = arith.constant 0 : index
    %c0_29 = arith.constant 0 : index
    %57 = vector.load %arg3[%c0_28, %c0_29] : memref<2x64xf32, #tpu.memory_space<vmem>>, vector<2x64xf32>
    tpu.vector_store %arg3[%c0_28, %c0_29], %56 {strides = array<i32>} : memref<2x64xf32, #tpu.memory_space<vmem>>, vector<2x64xf32>,
    %c0_30 = arith.constant 0 : index
    %c0_31 = arith.constant 0 : index
    %58 = vector.load %arg4[%c0_30, %c0_31] : memref<2x64xf32, #tpu.memory_space<vmem>>, vector<2x64xf32>
    tpu.vector_store %arg4[%c0_30, %c0_31], %54 {strides = array<i32>} : memref<2x64xf32, #tpu.memory_space<vmem>>, vector<2x64xf32>,
    %59 = arith.index_cast %c1_i32 : i32 to index
    %c0_32 = arith.constant 0 : index
    %c0_33 = arith.constant 0 : index
    %60 = vector.load %arg2[%59, %c0_32, %c0_33] : memref<8x2x64xf32, #tpu.memory_space<vmem>>, vector<1x2x64xf32>
    %61 = vector.shape_cast %60 : vector<1x2x64xf32> to vector<2x64xf32>
    %62 = vector.shape_cast %56 : vector<2x64xf32> to vector<1x2x64xf32>
    tpu.vector_store %arg2[%59, %c0_32, %c0_33], %62 {strides = array<i32>} : memref<8x2x64xf32, #tpu.memory_space<vmem>>, vector<1x2x64xf32>,
    %c2_i32 = arith.constant 2 : i32
    %c0_34 = arith.constant 0 : index
    %c0_35 = arith.constant 0 : index
    %63 = vector.load %arg3[%c0_34, %c0_35] : memref<2x64xf32, #tpu.memory_space<vmem>>, vector<2x64xf32>
    %c0_36 = arith.constant 0 : index
    %c0_37 = arith.constant 0 : index
    %64 = vector.load %arg4[%c0_36, %c0_37] : memref<2x64xf32, #tpu.memory_space<vmem>>, vector<2x64xf32>
    %65 = arith.index_cast %c2_i32 : i32 to index
    %c0_38 = arith.constant 0 : index
    %c0_39 = arith.constant 0 : index
    %66 = vector.load %arg0[%65, %c0_38, %c0_39] : memref<8x2x256xf32, #tpu.memory_space<vmem>>, vector<1x2x256xf32>
    %67 = vector.shape_cast %66 : vector<1x2x256xf32> to vector<2x256xf32>
    %cst_40 = arith.constant dense<0.000000e+00> : vector<2x256xf32>
    %68 = tpu.matmul %63, %4, %cst_40 {dimension_numbers = #tpu.dot_dimension_numbers<[1], [0], [0], [1], [0, 0, 1, 1], [], []>} : vector<2x64xf32>, vector<64x256xf32>, vector<2x256xf32> -> vector<2x256xf32>
    %69 = arith.addf %67, %68 : vector<2x256xf32>
    %70 = vector.extract_strided_slice %69 {offsets = [0, 0], sizes = [2, 192], strides = [1, 1]} : vector<2x256xf32> to vector<2x192xf32>
    %71 = arith.negf %70 : vector<2x192xf32>
    %72 = math.exp %71 : vector<2x192xf32>
    %cst_41 = arith.constant 1.000000e+00 : f32
    %73 = vector.broadcast %cst_41 : f32 to vector<2x192xf32>
    %74 = arith.addf %73, %72 : vector<2x192xf32>
    %75 = arith.divf %73, %74 : vector<2x192xf32>
    %76 = vector.extract_strided_slice %69 {offsets = [0, 192], sizes = [2, 64], strides = [1, 1]} : vector<2x256xf32> to vector<2x64xf32>
    %77 = math.tanh %76 : vector<2x64xf32>
    %78 = vector.extract_strided_slice %75 {offsets = [0, 0], sizes = [2, 64], strides = [1, 1]} : vector<2x192xf32> to vector<2x64xf32>
    %79 = vector.extract_strided_slice %75 {offsets = [0, 64], sizes = [2, 64], strides = [1, 1]} : vector<2x192xf32> to vector<2x64xf32>
    %80 = vector.extract_strided_slice %75 {offsets = [0, 128], sizes = [2, 64], strides = [1, 1]} : vector<2x192xf32> to vector<2x64xf32>
    %81 = arith.mulf %79, %64 : vector<2x64xf32>
    %82 = arith.mulf %78, %77 : vector<2x64xf32>
    %83 = arith.addf %81, %82 : vector<2x64xf32>
    %84 = math.tanh %83 : vector<2x64xf32>
    %85 = arith.mulf %80, %84 : vector<2x64xf32>
    %c0_42 = arith.constant 0 : index
    %c0_43 = arith.constant 0 : index
    %86 = vector.load %arg3[%c0_42, %c0_43] : memref<2x64xf32, #tpu.memory_space<vmem>>, vector<2x64xf32>
    tpu.vector_store %arg3[%c0_42, %c0_43], %85 {strides = array<i32>} : memref<2x64xf32, #tpu.memory_space<vmem>>, vector<2x64xf32>,
    %c0_44 = arith.constant 0 : index
    %c0_45 = arith.constant 0 : index
    %87 = vector.load %arg4[%c0_44, %c0_45] : memref<2x64xf32, #tpu.memory_space<vmem>>, vector<2x64xf32>
    tpu.vector_store %arg4[%c0_44, %c0_45], %83 {strides = array<i32>} : memref<2x64xf32, #tpu.memory_space<vmem>>, vector<2x64xf32>,
    %88 = arith.index_cast %c2_i32 : i32 to index
    %c0_46 = arith.constant 0 : index
    %c0_47 = arith.constant 0 : index
    %89 = vector.load %arg2[%88, %c0_46, %c0_47] : memref<8x2x64xf32, #tpu.memory_space<vmem>>, vector<1x2x64xf32>
    %90 = vector.shape_cast %89 : vector<1x2x64xf32> to vector<2x64xf32>
    %91 = vector.shape_cast %85 : vector<2x64xf32> to vector<1x2x64xf32>
    tpu.vector_store %arg2[%88, %c0_46, %c0_47], %91 {strides = array<i32>} : memref<8x2x64xf32, #tpu.memory_space<vmem>>, vector<1x2x64xf32>,
    %c3_i32 = arith.constant 3 : i32
    %c0_48 = arith.constant 0 : index
    %c0_49 = arith.constant 0 : index
    %92 = vector.load %arg3[%c0_48, %c0_49] : memref<2x64xf32, #tpu.memory_space<vmem>>, vector<2x64xf32>
    %c0_50 = arith.constant 0 : index
    %c0_51 = arith.constant 0 : index
    %93 = vector.load %arg4[%c0_50, %c0_51] : memref<2x64xf32, #tpu.memory_space<vmem>>, vector<2x64xf32>
    %94 = arith.index_cast %c3_i32 : i32 to index
    %c0_52 = arith.constant 0 : index
    %c0_53 = arith.constant 0 : index
    %95 = vector.load %arg0[%94, %c0_52, %c0_53] : memref<8x2x256xf32, #tpu.memory_space<vmem>>, vector<1x2x256xf32>
    %96 = vector.shape_cast %95 : vector<1x2x256xf32> to vector<2x256xf32>
    %cst_54 = arith.constant dense<0.000000e+00> : vector<2x256xf32>
    %97 = tpu.matmul %92, %4, %cst_54 {dimension_numbers = #tpu.dot_dimension_numbers<[1], [0], [0], [1], [0, 0, 1, 1], [], []>} : vector<2x64xf32>, vector<64x256xf32>, vector<2x256xf32> -> vector<2x256xf32>
    %98 = arith.addf %96, %97 : vector<2x256xf32>
    %99 = vector.extract_strided_slice %98 {offsets = [0, 0], sizes = [2, 192], strides = [1, 1]} : vector<2x256xf32> to vector<2x192xf32>
    %100 = arith.negf %99 : vector<2x192xf32>
    %101 = math.exp %100 : vector<2x192xf32>
    %cst_55 = arith.constant 1.000000e+00 : f32
    %102 = vector.broadcast %cst_55 : f32 to vector<2x192xf32>
    %103 = arith.addf %102, %101 : vector<2x192xf32>
    %104 = arith.divf %102, %103 : vector<2x192xf32>
    %105 = vector.extract_strided_slice %98 {offsets = [0, 192], sizes = [2, 64], strides = [1, 1]} : vector<2x256xf32> to vector<2x64xf32>
    %106 = math.tanh %105 : vector<2x64xf32>
    %107 = vector.extract_strided_slice %104 {offsets = [0, 0], sizes = [2, 64], strides = [1, 1]} : vector<2x192xf32> to vector<2x64xf32>
    %108 = vector.extract_strided_slice %104 {offsets = [0, 64], sizes = [2, 64], strides = [1, 1]} : vector<2x192xf32> to vector<2x64xf32>
    %109 = vector.extract_strided_slice %104 {offsets = [0, 128], sizes = [2, 64], strides = [1, 1]} : vector<2x192xf32> to vector<2x64xf32>
    %110 = arith.mulf %108, %93 : vector<2x64xf32>
    %111 = arith.mulf %107, %106 : vector<2x64xf32>
    %112 = arith.addf %110, %111 : vector<2x64xf32>
    %113 = math.tanh %112 : vector<2x64xf32>
    %114 = arith.mulf %109, %113 : vector<2x64xf32>
    %c0_56 = arith.constant 0 : index
    %c0_57 = arith.constant 0 : index
    %115 = vector.load %arg3[%c0_56, %c0_57] : memref<2x64xf32, #tpu.memory_space<vmem>>, vector<2x64xf32>
    tpu.vector_store %arg3[%c0_56, %c0_57], %114 {strides = array<i32>} : memref<2x64xf32, #tpu.memory_space<vmem>>, vector<2x64xf32>,
    %c0_58 = arith.constant 0 : index
    %c0_59 = arith.constant 0 : index
    %116 = vector.load %arg4[%c0_58, %c0_59] : memref<2x64xf32, #tpu.memory_space<vmem>>, vector<2x64xf32>
    tpu.vector_store %arg4[%c0_58, %c0_59], %112 {strides = array<i32>} : memref<2x64xf32, #tpu.memory_space<vmem>>, vector<2x64xf32>,
    %117 = arith.index_cast %c3_i32 : i32 to index
    %c0_60 = arith.constant 0 : index
    %c0_61 = arith.constant 0 : index
    %118 = vector.load %arg2[%117, %c0_60, %c0_61] : memref<8x2x64xf32, #tpu.memory_space<vmem>>, vector<1x2x64xf32>
    %119 = vector.shape_cast %118 : vector<1x2x64xf32> to vector<2x64xf32>
    %120 = vector.shape_cast %114 : vector<2x64xf32> to vector<1x2x64xf32>
    tpu.vector_store %arg2[%117, %c0_60, %c0_61], %120 {strides = array<i32>} : memref<8x2x64xf32, #tpu.memory_space<vmem>>, vector<1x2x64xf32>,
    %c4_i32 = arith.constant 4 : i32
    %c0_62 = arith.constant 0 : index
    %c0_63 = arith.constant 0 : index
    %121 = vector.load %arg3[%c0_62, %c0_63] : memref<2x64xf32, #tpu.memory_space<vmem>>, vector<2x64xf32>
    %c0_64 = arith.constant 0 : index
    %c0_65 = arith.constant 0 : index
    %122 = vector.load %arg4[%c0_64, %c0_65] : memref<2x64xf32, #tpu.memory_space<vmem>>, vector<2x64xf32>
    %123 = arith.index_cast %c4_i32 : i32 to index
    %c0_66 = arith.constant 0 : index
    %c0_67 = arith.constant 0 : index
    %124 = vector.load %arg0[%123, %c0_66, %c0_67] : memref<8x2x256xf32, #tpu.memory_space<vmem>>, vector<1x2x256xf32>
    %125 = vector.shape_cast %124 : vector<1x2x256xf32> to vector<2x256xf32>
    %cst_68 = arith.constant dense<0.000000e+00> : vector<2x256xf32>
    %126 = tpu.matmul %121, %4, %cst_68 {dimension_numbers = #tpu.dot_dimension_numbers<[1], [0], [0], [1], [0, 0, 1, 1], [], []>} : vector<2x64xf32>, vector<64x256xf32>, vector<2x256xf32> -> vector<2x256xf32>
    %127 = arith.addf %125, %126 : vector<2x256xf32>
    %128 = vector.extract_strided_slice %127 {offsets = [0, 0], sizes = [2, 192], strides = [1, 1]} : vector<2x256xf32> to vector<2x192xf32>
    %129 = arith.negf %128 : vector<2x192xf32>
    %130 = math.exp %129 : vector<2x192xf32>
    %cst_69 = arith.constant 1.000000e+00 : f32
    %131 = vector.broadcast %cst_69 : f32 to vector<2x192xf32>
    %132 = arith.addf %131, %130 : vector<2x192xf32>
    %133 = arith.divf %131, %132 : vector<2x192xf32>
    %134 = vector.extract_strided_slice %127 {offsets = [0, 192], sizes = [2, 64], strides = [1, 1]} : vector<2x256xf32> to vector<2x64xf32>
    %135 = math.tanh %134 : vector<2x64xf32>
    %136 = vector.extract_strided_slice %133 {offsets = [0, 0], sizes = [2, 64], strides = [1, 1]} : vector<2x192xf32> to vector<2x64xf32>
    %137 = vector.extract_strided_slice %133 {offsets = [0, 64], sizes = [2, 64], strides = [1, 1]} : vector<2x192xf32> to vector<2x64xf32>
    %138 = vector.extract_strided_slice %133 {offsets = [0, 128], sizes = [2, 64], strides = [1, 1]} : vector<2x192xf32> to vector<2x64xf32>
    %139 = arith.mulf %137, %122 : vector<2x64xf32>
    %140 = arith.mulf %136, %135 : vector<2x64xf32>
    %141 = arith.addf %139, %140 : vector<2x64xf32>
    %142 = math.tanh %141 : vector<2x64xf32>
    %143 = arith.mulf %138, %142 : vector<2x64xf32>
    %c0_70 = arith.constant 0 : index
    %c0_71 = arith.constant 0 : index
    %144 = vector.load %arg3[%c0_70, %c0_71] : memref<2x64xf32, #tpu.memory_space<vmem>>, vector<2x64xf32>
    tpu.vector_store %arg3[%c0_70, %c0_71], %143 {strides = array<i32>} : memref<2x64xf32, #tpu.memory_space<vmem>>, vector<2x64xf32>,
    %c0_72 = arith.constant 0 : index
    %c0_73 = arith.constant 0 : index
    %145 = vector.load %arg4[%c0_72, %c0_73] : memref<2x64xf32, #tpu.memory_space<vmem>>, vector<2x64xf32>
    tpu.vector_store %arg4[%c0_72, %c0_73], %141 {strides = array<i32>} : memref<2x64xf32, #tpu.memory_space<vmem>>, vector<2x64xf32>,
    %146 = arith.index_cast %c4_i32 : i32 to index
    %c0_74 = arith.constant 0 : index
    %c0_75 = arith.constant 0 : index
    %147 = vector.load %arg2[%146, %c0_74, %c0_75] : memref<8x2x64xf32, #tpu.memory_space<vmem>>, vector<1x2x64xf32>
    %148 = vector.shape_cast %147 : vector<1x2x64xf32> to vector<2x64xf32>
    %149 = vector.shape_cast %143 : vector<2x64xf32> to vector<1x2x64xf32>
    tpu.vector_store %arg2[%146, %c0_74, %c0_75], %149 {strides = array<i32>} : memref<8x2x64xf32, #tpu.memory_space<vmem>>, vector<1x2x64xf32>,
    %c5_i32 = arith.constant 5 : i32
    %c0_76 = arith.constant 0 : index
    %c0_77 = arith.constant 0 : index
    %150 = vector.load %arg3[%c0_76, %c0_77] : memref<2x64xf32, #tpu.memory_space<vmem>>, vector<2x64xf32>
    %c0_78 = arith.constant 0 : index
    %c0_79 = arith.constant 0 : index
    %151 = vector.load %arg4[%c0_78, %c0_79] : memref<2x64xf32, #tpu.memory_space<vmem>>, vector<2x64xf32>
    %152 = arith.index_cast %c5_i32 : i32 to index
    %c0_80 = arith.constant 0 : index
    %c0_81 = arith.constant 0 : index
    %153 = vector.load %arg0[%152, %c0_80, %c0_81] : memref<8x2x256xf32, #tpu.memory_space<vmem>>, vector<1x2x256xf32>
    %154 = vector.shape_cast %153 : vector<1x2x256xf32> to vector<2x256xf32>
    %cst_82 = arith.constant dense<0.000000e+00> : vector<2x256xf32>
    %155 = tpu.matmul %150, %4, %cst_82 {dimension_numbers = #tpu.dot_dimension_numbers<[1], [0], [0], [1], [0, 0, 1, 1], [], []>} : vector<2x64xf32>, vector<64x256xf32>, vector<2x256xf32> -> vector<2x256xf32>
    %156 = arith.addf %154, %155 : vector<2x256xf32>
    %157 = vector.extract_strided_slice %156 {offsets = [0, 0], sizes = [2, 192], strides = [1, 1]} : vector<2x256xf32> to vector<2x192xf32>
    %158 = arith.negf %157 : vector<2x192xf32>
    %159 = math.exp %158 : vector<2x192xf32>
    %cst_83 = arith.constant 1.000000e+00 : f32
    %160 = vector.broadcast %cst_83 : f32 to vector<2x192xf32>
    %161 = arith.addf %160, %159 : vector<2x192xf32>
    %162 = arith.divf %160, %161 : vector<2x192xf32>
    %163 = vector.extract_strided_slice %156 {offsets = [0, 192], sizes = [2, 64], strides = [1, 1]} : vector<2x256xf32> to vector<2x64xf32>
    %164 = math.tanh %163 : vector<2x64xf32>
    %165 = vector.extract_strided_slice %162 {offsets = [0, 0], sizes = [2, 64], strides = [1, 1]} : vector<2x192xf32> to vector<2x64xf32>
    %166 = vector.extract_strided_slice %162 {offsets = [0, 64], sizes = [2, 64], strides = [1, 1]} : vector<2x192xf32> to vector<2x64xf32>
    %167 = vector.extract_strided_slice %162 {offsets = [0, 128], sizes = [2, 64], strides = [1, 1]} : vector<2x192xf32> to vector<2x64xf32>
    %168 = arith.mulf %166, %151 : vector<2x64xf32>
    %169 = arith.mulf %165, %164 : vector<2x64xf32>
    %170 = arith.addf %168, %169 : vector<2x64xf32>
    %171 = math.tanh %170 : vector<2x64xf32>
    %172 = arith.mulf %167, %171 : vector<2x64xf32>
    %c0_84 = arith.constant 0 : index
    %c0_85 = arith.constant 0 : index
    %173 = vector.load %arg3[%c0_84, %c0_85] : memref<2x64xf32, #tpu.memory_space<vmem>>, vector<2x64xf32>
    tpu.vector_store %arg3[%c0_84, %c0_85], %172 {strides = array<i32>} : memref<2x64xf32, #tpu.memory_space<vmem>>, vector<2x64xf32>,
    %c0_86 = arith.constant 0 : index
    %c0_87 = arith.constant 0 : index
    %174 = vector.load %arg4[%c0_86, %c0_87] : memref<2x64xf32, #tpu.memory_space<vmem>>, vector<2x64xf32>
    tpu.vector_store %arg4[%c0_86, %c0_87], %170 {strides = array<i32>} : memref<2x64xf32, #tpu.memory_space<vmem>>, vector<2x64xf32>,
    %175 = arith.index_cast %c5_i32 : i32 to index
    %c0_88 = arith.constant 0 : index
    %c0_89 = arith.constant 0 : index
    %176 = vector.load %arg2[%175, %c0_88, %c0_89] : memref<8x2x64xf32, #tpu.memory_space<vmem>>, vector<1x2x64xf32>
    %177 = vector.shape_cast %176 : vector<1x2x64xf32> to vector<2x64xf32>
    %178 = vector.shape_cast %172 : vector<2x64xf32> to vector<1x2x64xf32>
    tpu.vector_store %arg2[%175, %c0_88, %c0_89], %178 {strides = array<i32>} : memref<8x2x64xf32, #tpu.memory_space<vmem>>, vector<1x2x64xf32>,
    %c6_i32 = arith.constant 6 : i32
    %c0_90 = arith.constant 0 : index
    %c0_91 = arith.constant 0 : index
    %179 = vector.load %arg3[%c0_90, %c0_91] : memref<2x64xf32, #tpu.memory_space<vmem>>, vector<2x64xf32>
    %c0_92 = arith.constant 0 : index
    %c0_93 = arith.constant 0 : index
    %180 = vector.load %arg4[%c0_92, %c0_93] : memref<2x64xf32, #tpu.memory_space<vmem>>, vector<2x64xf32>
    %181 = arith.index_cast %c6_i32 : i32 to index
    %c0_94 = arith.constant 0 : index
    %c0_95 = arith.constant 0 : index
    %182 = vector.load %arg0[%181, %c0_94, %c0_95] : memref<8x2x256xf32, #tpu.memory_space<vmem>>, vector<1x2x256xf32>
    %183 = vector.shape_cast %182 : vector<1x2x256xf32> to vector<2x256xf32>
    %cst_96 = arith.constant dense<0.000000e+00> : vector<2x256xf32>
    %184 = tpu.matmul %179, %4, %cst_96 {dimension_numbers = #tpu.dot_dimension_numbers<[1], [0], [0], [1], [0, 0, 1, 1], [], []>} : vector<2x64xf32>, vector<64x256xf32>, vector<2x256xf32> -> vector<2x256xf32>
    %185 = arith.addf %183, %184 : vector<2x256xf32>
    %186 = vector.extract_strided_slice %185 {offsets = [0, 0], sizes = [2, 192], strides = [1, 1]} : vector<2x256xf32> to vector<2x192xf32>
    %187 = arith.negf %186 : vector<2x192xf32>
    %188 = math.exp %187 : vector<2x192xf32>
    %cst_97 = arith.constant 1.000000e+00 : f32
    %189 = vector.broadcast %cst_97 : f32 to vector<2x192xf32>
    %190 = arith.addf %189, %188 : vector<2x192xf32>
    %191 = arith.divf %189, %190 : vector<2x192xf32>
    %192 = vector.extract_strided_slice %185 {offsets = [0, 192], sizes = [2, 64], strides = [1, 1]} : vector<2x256xf32> to vector<2x64xf32>
    %193 = math.tanh %192 : vector<2x64xf32>
    %194 = vector.extract_strided_slice %191 {offsets = [0, 0], sizes = [2, 64], strides = [1, 1]} : vector<2x192xf32> to vector<2x64xf32>
    %195 = vector.extract_strided_slice %191 {offsets = [0, 64], sizes = [2, 64], strides = [1, 1]} : vector<2x192xf32> to vector<2x64xf32>
    %196 = vector.extract_strided_slice %191 {offsets = [0, 128], sizes = [2, 64], strides = [1, 1]} : vector<2x192xf32> to vector<2x64xf32>
    %197 = arith.mulf %195, %180 : vector<2x64xf32>
    %198 = arith.mulf %194, %193 : vector<2x64xf32>
    %199 = arith.addf %197, %198 : vector<2x64xf32>
    %200 = math.tanh %199 : vector<2x64xf32>
    %201 = arith.mulf %196, %200 : vector<2x64xf32>
    %c0_98 = arith.constant 0 : index
    %c0_99 = arith.constant 0 : index
    %202 = vector.load %arg3[%c0_98, %c0_99] : memref<2x64xf32, #tpu.memory_space<vmem>>, vector<2x64xf32>
    tpu.vector_store %arg3[%c0_98, %c0_99], %201 {strides = array<i32>} : memref<2x64xf32, #tpu.memory_space<vmem>>, vector<2x64xf32>,
    %c0_100 = arith.constant 0 : index
    %c0_101 = arith.constant 0 : index
    %203 = vector.load %arg4[%c0_100, %c0_101] : memref<2x64xf32, #tpu.memory_space<vmem>>, vector<2x64xf32>
    tpu.vector_store %arg4[%c0_100, %c0_101], %199 {strides = array<i32>} : memref<2x64xf32, #tpu.memory_space<vmem>>, vector<2x64xf32>,
    %204 = arith.index_cast %c6_i32 : i32 to index
    %c0_102 = arith.constant 0 : index
    %c0_103 = arith.constant 0 : index
    %205 = vector.load %arg2[%204, %c0_102, %c0_103] : memref<8x2x64xf32, #tpu.memory_space<vmem>>, vector<1x2x64xf32>
    %206 = vector.shape_cast %205 : vector<1x2x64xf32> to vector<2x64xf32>
    %207 = vector.shape_cast %201 : vector<2x64xf32> to vector<1x2x64xf32>
    tpu.vector_store %arg2[%204, %c0_102, %c0_103], %207 {strides = array<i32>} : memref<8x2x64xf32, #tpu.memory_space<vmem>>, vector<1x2x64xf32>,
    %c7_i32 = arith.constant 7 : i32
    %c0_104 = arith.constant 0 : index
    %c0_105 = arith.constant 0 : index
    %208 = vector.load %arg3[%c0_104, %c0_105] : memref<2x64xf32, #tpu.memory_space<vmem>>, vector<2x64xf32>
    %c0_106 = arith.constant 0 : index
    %c0_107 = arith.constant 0 : index
    %209 = vector.load %arg4[%c0_106, %c0_107] : memref<2x64xf32, #tpu.memory_space<vmem>>, vector<2x64xf32>
    %210 = arith.index_cast %c7_i32 : i32 to index
    %c0_108 = arith.constant 0 : index
    %c0_109 = arith.constant 0 : index
    %211 = vector.load %arg0[%210, %c0_108, %c0_109] : memref<8x2x256xf32, #tpu.memory_space<vmem>>, vector<1x2x256xf32>
    %212 = vector.shape_cast %211 : vector<1x2x256xf32> to vector<2x256xf32>
    %cst_110 = arith.constant dense<0.000000e+00> : vector<2x256xf32>
    %213 = tpu.matmul %208, %4, %cst_110 {dimension_numbers = #tpu.dot_dimension_numbers<[1], [0], [0], [1], [0, 0, 1, 1], [], []>} : vector<2x64xf32>, vector<64x256xf32>, vector<2x256xf32> -> vector<2x256xf32>
    %214 = arith.addf %212, %213 : vector<2x256xf32>
    %215 = vector.extract_strided_slice %214 {offsets = [0, 0], sizes = [2, 192], strides = [1, 1]} : vector<2x256xf32> to vector<2x192xf32>
    %216 = arith.negf %215 : vector<2x192xf32>
    %217 = math.exp %216 : vector<2x192xf32>
    %cst_111 = arith.constant 1.000000e+00 : f32
    %218 = vector.broadcast %cst_111 : f32 to vector<2x192xf32>
    %219 = arith.addf %218, %217 : vector<2x192xf32>
    %220 = arith.divf %218, %219 : vector<2x192xf32>
    %221 = vector.extract_strided_slice %214 {offsets = [0, 192], sizes = [2, 64], strides = [1, 1]} : vector<2x256xf32> to vector<2x64xf32>
    %222 = math.tanh %221 : vector<2x64xf32>
    %223 = vector.extract_strided_slice %220 {offsets = [0, 0], sizes = [2, 64], strides = [1, 1]} : vector<2x192xf32> to vector<2x64xf32>
    %224 = vector.extract_strided_slice %220 {offsets = [0, 64], sizes = [2, 64], strides = [1, 1]} : vector<2x192xf32> to vector<2x64xf32>
    %225 = vector.extract_strided_slice %220 {offsets = [0, 128], sizes = [2, 64], strides = [1, 1]} : vector<2x192xf32> to vector<2x64xf32>
    %226 = arith.mulf %224, %209 : vector<2x64xf32>
    %227 = arith.mulf %223, %222 : vector<2x64xf32>
    %228 = arith.addf %226, %227 : vector<2x64xf32>
    %229 = math.tanh %228 : vector<2x64xf32>
    %230 = arith.mulf %225, %229 : vector<2x64xf32>
    %c0_112 = arith.constant 0 : index
    %c0_113 = arith.constant 0 : index
    %231 = vector.load %arg3[%c0_112, %c0_113] : memref<2x64xf32, #tpu.memory_space<vmem>>, vector<2x64xf32>
    tpu.vector_store %arg3[%c0_112, %c0_113], %230 {strides = array<i32>} : memref<2x64xf32, #tpu.memory_space<vmem>>, vector<2x64xf32>,
    %c0_114 = arith.constant 0 : index
    %c0_115 = arith.constant 0 : index
    %232 = vector.load %arg4[%c0_114, %c0_115] : memref<2x64xf32, #tpu.memory_space<vmem>>, vector<2x64xf32>
    tpu.vector_store %arg4[%c0_114, %c0_115], %228 {strides = array<i32>} : memref<2x64xf32, #tpu.memory_space<vmem>>, vector<2x64xf32>,
    %233 = arith.index_cast %c7_i32 : i32 to index
    %c0_116 = arith.constant 0 : index
    %c0_117 = arith.constant 0 : index
    %234 = vector.load %arg2[%233, %c0_116, %c0_117] : memref<8x2x64xf32, #tpu.memory_space<vmem>>, vector<1x2x64xf32>
    %235 = vector.shape_cast %234 : vector<1x2x64xf32> to vector<2x64xf32>
    %236 = vector.shape_cast %230 : vector<2x64xf32> to vector<1x2x64xf32>
    tpu.vector_store %arg2[%233, %c0_116, %c0_117], %236 {strides = array<i32>} : memref<8x2x64xf32, #tpu.memory_space<vmem>>, vector<1x2x64xf32>,
    %c8_i32 = arith.constant 8 : i32
    return
  }
}

</mosaic_0001>

<llo_original>
// kernel: reverse.3
$region0: #{reverse.3}
  #allocation0 [shape = 's32[1]{0}', space=sflag, size = 0x4, scoped, tag = 'scoped memory for reverse.3']
  %s0 = inlined_call_operand.vmem [shape: f32[8,2,32], index: 0, kind: input, shape index: {}]
  %s1 = inlined_call_operand.vmem [shape: f32[8,2,32], index: 1, kind: output, shape index: {}]
  %s2 = scalar_lea.vmem %s0, 14
  %v3 = vld [vmem:[%s2] sm:$0x3]
  %4 = vst [vmem:[%s1] sm:$0x3] %v3
  %s5 = scalar_lea.vmem %s0, 12
  %v6 = vld [vmem:[%s5] sm:$0x3]
  %s7 = scalar_lea.vmem %s1, 2
  %8 = vst [vmem:[%s7] sm:$0x3] %v6
  %s9 = scalar_lea.vmem %s0, 10
  %v10 = vld [vmem:[%s9] sm:$0x3]
  %s11 = scalar_lea.vmem %s1, 4
  %12 = vst [vmem:[%s11] sm:$0x3] %v10
  %s13 = scalar_lea.vmem %s0, 8
  %v14 = vld [vmem:[%s13] sm:$0x3]
  %s15 = scalar_lea.vmem %s1, 6
  %16 = vst [vmem:[%s15] sm:$0x3] %v14
  %s17 = scalar_lea.vmem %s0, 6
  %v18 = vld [vmem:[%s17] sm:$0x3]
  %s19 = scalar_lea.vmem %s1, 8
  %20 = vst [vmem:[%s19] sm:$0x3] %v18
  %s21 = scalar_lea.vmem %s0, 4
  %v22 = vld [vmem:[%s21] sm:$0x3]
  %s23 = scalar_lea.vmem %s1, 10
  %24 = vst [vmem:[%s23] sm:$0x3] %v22
  %s25 = scalar_lea.vmem %s0, 2
  %v26 = vld [vmem:[%s25] sm:$0x3]
  %s27 = scalar_lea.vmem %s1, 12
  %28 = vst [vmem:[%s27] sm:$0x3] %v26
  %v29 = vld [vmem:[%s0] sm:$0x3]
  %s30 = scalar_lea.vmem %s1, 14
  %31 = vst [vmem:[%s30] sm:$0x3] %v29

// kernel: modeling_layer_forward.1
$region0: #{modeling_layer_forward.1}
  #allocation0 [shape = 'u32[]', space=smem, size = 0x4, offset = 0x4, fixed_abs, tag = 'smem constant byte address 0x4 - core index']
  #allocation1 [shape = 'u32[72,128]{1,0:T(1,128)}', space=vmem, size = 0x9000, scoped, tag = 'internal scratch']
  #allocation2 [shape = 'f32[2,64]{1,0:T(2,128)}', space=vmem, size = 0x400, scoped, tag = 'scratch operand']
  #allocation3 [shape = 'f32[2,64]{1,0:T(2,128)}', space=vmem, size = 0x400, scoped, tag = 'scratch operand']
  %s0 = inlined_call_operand.vmem [shape: f32[8,2,256], index: 0, kind: input, shape index: {}]
  %s1 = inlined_call_operand.vmem [shape: f32[64,256], index: 1, kind: input, shape index: {}]
  %s2 = inlined_call_operand.vmem [shape: f32[8,2,64], index: 2, kind: output, shape index: {}]
  %s3 = sld [smem:[#allocation0]]
  $region18: #{modeling_layer_forward.1} parent=0
    _
  %s5 = ssub.s32 1, %s3
  %s6 = scalar_select 0, %s5, %s3
  // Predicated region
  $region2: #{modeling_layer_forward.1} parent=0 // pred_check
    _
  $region3: #{modeling_layer_forward.1} parent=0 // pred_check_branch
    %8 = sbr.rel (0) target = $region5
  $region4: #{modeling_layer_forward.1} parent=0 // pred_region
    _
  $region5: #{modeling_layer_forward.1} parent=0 // pred_fallthru
    _
  // Predicated region
  $region6: #{modeling_layer_forward.1} parent=0 // pred_check
    _
  $region7: #{modeling_layer_forward.1} parent=0 // pred_check_branch
    %10 = sbr.rel (0) target = $region9
  $region8: #{modeling_layer_forward.1} parent=0 // pred_region
    _
  $region9: #{modeling_layer_forward.1} parent=0 // pred_fallthru
    _
  %vm11 = vcmask 517120
  %12 = vst.msk [vmem:[#allocation2] sm:$0x3] %vm11, 0.0
  %13 = vst.msk [vmem:[#allocation3] sm:$0x3] %vm11, 0.0
  %v14 = vld [vmem:[%s1] sm:$0xff]
  %v15 = vld [vmem:[%s1 + $0x8] sm:$0xff]
  %v16 = vld [vmem:[%s1 + $0x10] sm:$0xff]
  %v17 = vld [vmem:[%s1 + $0x18] sm:$0xff]
  %v18 = vld [vmem:[%s1 + $0x20] sm:$0xff]
  %v19 = vld [vmem:[%s1 + $0x28] sm:$0xff]
  %v20 = vld [vmem:[%s1 + $0x30] sm:$0xff]
  %v21 = vld [vmem:[%s1 + $0x38] sm:$0xff]
  %v22 = vld [vmem:[%s1 + $0x40] sm:$0xff]
  %v23 = vld [vmem:[%s1 + $0x48] sm:$0xff]
  %v24 = vld [vmem:[%s1 + $0x50] sm:$0xff]
  %v25 = vld [vmem:[%s1 + $0x58] sm:$0xff]
  %v26 = vld [vmem:[%s1 + $0x60] sm:$0xff]
  %v27 = vld [vmem:[%s1 + $0x68] sm:$0xff]
  %v28 = vld [vmem:[%s1 + $0x70] sm:$0xff]
  %v29 = vld [vmem:[%s1 + $0x78] sm:$0xff]
  %v30 = vld [vmem:[#allocation2] sm:$0x3]
  %v31 = vld [vmem:[#allocation3] sm:$0x3]
  %v32 = vld [vmem:[%s0] sm:$0xf]
  %vm33 = vcmask 523264
  %v35 = vsel %vm33, %v30, 0
  %37 = vmatpush.msra.mxu0 0.0
  %38 = vmatpush.msra.mxu0 0.0
  %39 = vmatpush.msra.mxu0 0.0
  %40 = vmatpush.msra.mxu0 0.0
  %41 = vmatpush.msra.mxu0 0.0
  %42 = vmatpush.msra.mxu0 0.0
  %43 = vmatpush.msra.mxu0 0.0
  %44 = vmatpush.msra.mxu0 0.0
  %45 = vmatpush.msra.mxu0 %v28
  %46 = vmatpush.msra.mxu0 %v26
  %47 = vmatpush.msra.mxu0 %v24
  %48 = vmatpush.msra.mxu0 %v22
  %49 = vmatpush.msra.mxu0 %v20
  %50 = vmatpush.msra.mxu0 %v18
  %51 = vmatpush.msra.mxu0 %v16
  %52 = vmatpush.msra.mxu0 %v14
  %53 = vmatmul.f32.gmra.mxu0 %v35
  %v54 = vpop.f32.mrf.mxu0
  %v55 = vadd.f32 0.0, %v54
  %56 = vdwg.mxu0
  %57 = vmatpush.msra.mxu0 0.0
  %58 = vmatpush.msra.mxu0 0.0
  %59 = vmatpush.msra.mxu0 0.0
  %60 = vmatpush.msra.mxu0 0.0
  %61 = vmatpush.msra.mxu0 0.0
  %62 = vmatpush.msra.mxu0 0.0
  %63 = vmatpush.msra.mxu0 0.0
  %64 = vmatpush.msra.mxu0 0.0
  %65 = vmatpush.msra.mxu0 %v29
  %66 = vmatpush.msra.mxu0 %v27
  %67 = vmatpush.msra.mxu0 %v25
  %68 = vmatpush.msra.mxu0 %v23
  %69 = vmatpush.msra.mxu0 %v21
  %70 = vmatpush.msra.mxu0 %v19
  %71 = vmatpush.msra.mxu0 %v17
  %72 = vmatpush.msra.mxu0 %v15
  %73 = vmatmul.f32.gmra.mxu0 %v35
  %v74 = vpop.f32.mrf.mxu0
  %v75 = vadd.f32 0.0, %v74
  %76 = vdwg.mxu0
  %v79 = vrot.slane %v75, 6
  %vm80 = vcmask 1041408
  %v81 = vsel %vm80, %v55, %v79
  %v83 = vadd.f32 %v32, %v81
  %v84 = vxor.u32 %v83, 2147483648
  %v85 = vmul.f32 %v84, 1.442695
  %v86 = vpow.pop %v85
  %v87 = vadd.f32 %v86, 1.0
  %v88 = vrcp.pop %v87
  %v89 = vmul.f32 %v87, %v88
  %v90 = vsub.f32 1.0, %v89
  %v91 = vmul.f32 %v88, %v90
  %v92 = vadd.f32 %v88, %v91
  %vm93 = vweird.f32 %v87
  %vm94 = vweird.f32 %v88
  %vm95 = vmor %vm93, %vm94
  %v96 = vsel %vm95, %v88, %v92
  %v97 = vand.u32 2147483647, %v87
  %vm98 = vcmp.eq.f32.partialorder %v97, 8.507059e+37
  %v99 = vand.u32 %v87, 2147483648
  %v100 = vor.u32 1.1754944e-38, %v99
  %v101 = vsel %vm98, %v100, %v96
  %v102 = vmul.f32 1.0, %v101
  %104 = vrot.lane.b32.xlu0 %v83, 64
  %v105 = vpop.permute.xlu0 %104
  %v106 = vrot.slane %v105, 2
  %v108 = vtanh.pop %v106
  %110 = vrot.lane.b32.xlu0 %v31, 64
  %v111 = vpop.permute.xlu0 %110
  %v113 = vmul.f32 %v102, %v111
  %v114 = vmul.f32 %v102, %v108
  %116 = vrot.lane.b32.xlu0 %v114, 64
  %v117 = vpop.permute.xlu0 %116
  %v119 = vadd.f32 %v113, %v117
  %v120 = vtanh.pop %v119
  %v122 = vrot.slane %v102, 2
  %125 = vrot.lane.b32.xlu0 %v120, 64
  %v126 = vpop.permute.xlu0 %125
  %v128 = vmul.f32 %v122, %v126
  %129 = vst.msk [vmem:[#allocation2] sm:$0x3] %vm11, %v128
  %131 = vst [vmem:[#allocation1] ss:$4 sm:$0xff] %v119
  %v132 = vld.sshfl [vmem:[#allocation1] sm:$0xff pattern:$0x73625140]
  %133 = vrot.lane.b32.xlu0 %v132, 64
  %v134 = vpop.permute.xlu0 %133
  %136 = vst.msk [vmem:[#allocation3] sm:$0x3] %vm11, %v134
  %137 = vst.msk [vmem:[%s2] sm:$0x3] %vm11, %v128
  %v138 = vld [vmem:[#allocation2] sm:$0x3]
  %v139 = vld [vmem:[#allocation3] sm:$0x3]
  %s140 = scalar_lea.vmem %s0, 4
  %v141 = vld [vmem:[%s140] sm:$0xf]
  %v143 = vsel %vm33, %v138, 0
  %145 = vmatpush.msra.mxu0 0.0
  %146 = vmatpush.msra.mxu0 0.0
  %147 = vmatpush.msra.mxu0 0.0
  %148 = vmatpush.msra.mxu0 0.0
  %149 = vmatpush.msra.mxu0 0.0
  %150 = vmatpush.msra.mxu0 0.0
  %151 = vmatpush.msra.mxu0 0.0
  %152 = vmatpush.msra.mxu0 0.0
  %153 = vmatpush.msra.mxu0 %v28
  %154 = vmatpush.msra.mxu0 %v26
  %155 = vmatpush.msra.mxu0 %v24
  %156 = vmatpush.msra.mxu0 %v22
  %157 = vmatpush.msra.mxu0 %v20
  %158 = vmatpush.msra.mxu0 %v18
  %159 = vmatpush.msra.mxu0 %v16
  %160 = vmatpush.msra.mxu0 %v14
  %161 = vmatmul.f32.gmra.mxu0 %v143
  %v162 = vpop.f32.mrf.mxu0
  %v163 = vadd.f32 0.0, %v162
  %164 = vdwg.mxu0
  %165 = vmatpush.msra.mxu0 0.0
  %166 = vmatpush.msra.mxu0 0.0
  %167 = vmatpush.msra.mxu0 0.0
  %168 = vmatpush.msra.mxu0 0.0
  %169 = vmatpush.msra.mxu0 0.0
  %170 = vmatpush.msra.mxu0 0.0
  %171 = vmatpush.msra.mxu0 0.0
  %172 = vmatpush.msra.mxu0 0.0
  %173 = vmatpush.msra.mxu0 %v29
  %174 = vmatpush.msra.mxu0 %v27
  %175 = vmatpush.msra.mxu0 %v25
  %176 = vmatpush.msra.mxu0 %v23
  %177 = vmatpush.msra.mxu0 %v21
  %178 = vmatpush.msra.mxu0 %v19
  %179 = vmatpush.msra.mxu0 %v17
  %180 = vmatpush.msra.mxu0 %v15
  %181 = vmatmul.f32.gmra.mxu0 %v143
  %v182 = vpop.f32.mrf.mxu0
  %v183 = vadd.f32 0.0, %v182
  %184 = vdwg.mxu0
  %v187 = vrot.slane %v183, 6
  %v188 = vsel %vm80, %v163, %v187
  %v190 = vadd.f32 %v141, %v188
  %v191 = vxor.u32 %v190, 2147483648
  %v192 = vmul.f32 %v191, 1.442695
  %v193 = vpow.pop %v192
  %v194 = vadd.f32 %v193, 1.0
  %v195 = vrcp.pop %v194
  %v196 = vmul.f32 %v194, %v195
  %v197 = vsub.f32 1.0, %v196
  %v198 = vmul.f32 %v195, %v197
  %v199 = vadd.f32 %v195, %v198
  %vm200 = vweird.f32 %v194
  %vm201 = vweird.f32 %v195
  %vm202 = vmor %vm200, %vm201
  %v203 = vsel %vm202, %v195, %v199
  %v204 = vand.u32 2147483647, %v194
  %vm205 = vcmp.eq.f32.partialorder %v204, 8.507059e+37
  %v206 = vand.u32 %v194, 2147483648
  %v207 = vor.u32 1.1754944e-38, %v206
  %v208 = vsel %vm205, %v207, %v203
  %v209 = vmul.f32 1.0, %v208
  %211 = vrot.lane.b32.xlu0 %v190, 64
  %v212 = vpop.permute.xlu0 %211
  %v213 = vrot.slane %v212, 2
  %v215 = vtanh.pop %v213
  %217 = vrot.lane.b32.xlu0 %v139, 64
  %v218 = vpop.permute.xlu0 %217
  %v220 = vmul.f32 %v209, %v218
  %v221 = vmul.f32 %v209, %v215
  %223 = vrot.lane.b32.xlu0 %v221, 64
  %v224 = vpop.permute.xlu0 %223
  %v226 = vadd.f32 %v220, %v224
  %v227 = vtanh.pop %v226
  %v229 = vrot.slane %v209, 2
  %232 = vrot.lane.b32.xlu0 %v227, 64
  %v233 = vpop.permute.xlu0 %232
  %v235 = vmul.f32 %v229, %v233
  %236 = vst.msk [vmem:[#allocation2] sm:$0x3] %vm11, %v235
  %238 = vst [vmem:[#allocation1] ss:$4 sm:$0xff] %v226
  %v239 = vld.sshfl [vmem:[#allocation1] sm:$0xff pattern:$0x73625140]
  %240 = vrot.lane.b32.xlu0 %v239, 64
  %v241 = vpop.permute.xlu0 %240
  %243 = vst.msk [vmem:[#allocation3] sm:$0x3] %vm11, %v241
  %s244 = scalar_lea.vmem %s2, 2
  %245 = vst.msk [vmem:[%s244] sm:$0x3] %vm11, %v235
  %v246 = vld [vmem:[#allocation2] sm:$0x3]
  %v247 = vld [vmem:[#allocation3] sm:$0x3]
  %s248 = scalar_lea.vmem %s0, 8
  %v249 = vld [vmem:[%s248] sm:$0xf]
  %v251 = vsel %vm33, %v246, 0
  %253 = vmatpush.msra.mxu0 0.0
  %254 = vmatpush.msra.mxu0 0.0
  %255 = vmatpush.msra.mxu0 0.0
  %256 = vmatpush.msra.mxu0 0.0
  %257 = vmatpush.msra.mxu0 0.0
  %258 = vmatpush.msra.mxu0 0.0
  %259 = vmatpush.msra.mxu0 0.0
  %260 = vmatpush.msra.mxu0 0.0
  %261 = vmatpush.msra.mxu0 %v28
  %262 = vmatpush.msra.mxu0 %v26
  %263 = vmatpush.msra.mxu0 %v24
  %264 = vmatpush.msra.mxu0 %v22
  %265 = vmatpush.msra.mxu0 %v20
  %266 = vmatpush.msra.mxu0 %v18
  %267 = vmatpush.msra.mxu0 %v16
  %268 = vmatpush.msra.mxu0 %v14
  %269 = vmatmul.f32.gmra.mxu0 %v251
  %v270 = vpop.f32.mrf.mxu0
  %v271 = vadd.f32 0.0, %v270
  %272 = vdwg.mxu0
  %273 = vmatpush.msra.mxu0 0.0
  %274 = vmatpush.msra.mxu0 0.0
  %275 = vmatpush.msra.mxu0 0.0
  %276 = vmatpush.msra.mxu0 0.0
  %277 = vmatpush.msra.mxu0 0.0
  %278 = vmatpush.msra.mxu0 0.0
  %279 = vmatpush.msra.mxu0 0.0
  %280 = vmatpush.msra.mxu0 0.0
  %281 = vmatpush.msra.mxu0 %v29
  %282 = vmatpush.msra.mxu0 %v27
  %283 = vmatpush.msra.mxu0 %v25
  %284 = vmatpush.msra.mxu0 %v23
  %285 = vmatpush.msra.mxu0 %v21
  %286 = vmatpush.msra.mxu0 %v19
  %287 = vmatpush.msra.mxu0 %v17
  %288 = vmatpush.msra.mxu0 %v15
  %289 = vmatmul.f32.gmra.mxu0 %v251
  %v290 = vpop.f32.mrf.mxu0
  %v291 = vadd.f32 0.0, %v290
  %292 = vdwg.mxu0
  %v295 = vrot.slane %v291, 6
  %v296 = vsel %vm80, %v271, %v295
  %v298 = vadd.f32 %v249, %v296
  %v299 = vxor.u32 %v298, 2147483648
  %v300 = vmul.f32 %v299, 1.442695
  %v301 = vpow.pop %v300
  %v302 = vadd.f32 %v301, 1.0
  %v303 = vrcp.pop %v302
  %v304 = vmul.f32 %v302, %v303
  %v305 = vsub.f32 1.0, %v304
  %v306 = vmul.f32 %v303, %v305
  %v307 = vadd.f32 %v303, %v306
  %vm308 = vweird.f32 %v302
  %vm309 = vweird.f32 %v303
  %vm310 = vmor %vm308, %vm309
  %v311 = vsel %vm310, %v303, %v307
  %v312 = vand.u32 2147483647, %v302
  %vm313 = vcmp.eq.f32.partialorder %v312, 8.507059e+37
  %v314 = vand.u32 %v302, 2147483648
  %v315 = vor.u32 1.1754944e-38, %v314
  %v316 = vsel %vm313, %v315, %v311
  %v317 = vmul.f32 1.0, %v316
  %319 = vrot.lane.b32.xlu0 %v298, 64
  %v320 = vpop.permute.xlu0 %319
  %v321 = vrot.slane %v320, 2
  %v323 = vtanh.pop %v321
  %325 = vrot.lane.b32.xlu0 %v247, 64
  %v326 = vpop.permute.xlu0 %325
  %v328 = vmul.f32 %v317, %v326
  %v329 = vmul.f32 %v317, %v323
  %331 = vrot.lane.b32.xlu0 %v329, 64
  %v332 = vpop.permute.xlu0 %331
  %v334 = vadd.f32 %v328, %v332
  %v335 = vtanh.pop %v334
  %v337 = vrot.slane %v317, 2
  %340 = vrot.lane.b32.xlu0 %v335, 64
  %v341 = vpop.permute.xlu0 %340
  %v343 = vmul.f32 %v337, %v341
  %344 = vst.msk [vmem:[#allocation2] sm:$0x3] %vm11, %v343
  %346 = vst [vmem:[#allocation1] ss:$4 sm:$0xff] %v334
  %v347 = vld.sshfl [vmem:[#allocation1] sm:$0xff pattern:$0x73625140]
  %348 = vrot.lane.b32.xlu0 %v347, 64
  %v349 = vpop.permute.xlu0 %348
  %351 = vst.msk [vmem:[#allocation3] sm:$0x3] %vm11, %v349
  %s352 = scalar_lea.vmem %s2, 4
  %353 = vst.msk [vmem:[%s352] sm:$0x3] %vm11, %v343
  %v354 = vld [vmem:[#allocation2] sm:$0x3]
  %v355 = vld [vmem:[#allocation3] sm:$0x3]
  %s356 = scalar_lea.vmem %s0, 12
  %v357 = vld [vmem:[%s356] sm:$0xf]
  %v359 = vsel %vm33, %v354, 0
  %361 = vmatpush.msra.mxu0 0.0
  %362 = vmatpush.msra.mxu0 0.0
  %363 = vmatpush.msra.mxu0 0.0
  %364 = vmatpush.msra.mxu0 0.0
  %365 = vmatpush.msra.mxu0 0.0
  %366 = vmatpush.msra.mxu0 0.0
  %367 = vmatpush.msra.mxu0 0.0
  %368 = vmatpush.msra.mxu0 0.0
  %369 = vmatpush.msra.mxu0 %v28
  %370 = vmatpush.msra.mxu0 %v26
  %371 = vmatpush.msra.mxu0 %v24
  %372 = vmatpush.msra.mxu0 %v22
  %373 = vmatpush.msra.mxu0 %v20
  %374 = vmatpush.msra.mxu0 %v18
  %375 = vmatpush.msra.mxu0 %v16
  %376 = vmatpush.msra.mxu0 %v14
  %377 = vmatmul.f32.gmra.mxu0 %v359
  %v378 = vpop.f32.mrf.mxu0
  %v379 = vadd.f32 0.0, %v378
  %380 = vdwg.mxu0
  %381 = vmatpush.msra.mxu0 0.0
  %382 = vmatpush.msra.mxu0 0.0
  %383 = vmatpush.msra.mxu0 0.0
  %384 = vmatpush.msra.mxu0 0.0
  %385 = vmatpush.msra.mxu0 0.0
  %386 = vmatpush.msra.mxu0 0.0
  %387 = vmatpush.msra.mxu0 0.0
  %388 = vmatpush.msra.mxu0 0.0
  %389 = vmatpush.msra.mxu0 %v29
  %390 = vmatpush.msra.mxu0 %v27
  %391 = vmatpush.msra.mxu0 %v25
  %392 = vmatpush.msra.mxu0 %v23
  %393 = vmatpush.msra.mxu0 %v21
  %394 = vmatpush.msra.mxu0 %v19
  %395 = vmatpush.msra.mxu0 %v17
  %396 = vmatpush.msra.mxu0 %v15
  %397 = vmatmul.f32.gmra.mxu0 %v359
  %v398 = vpop.f32.mrf.mxu0
  %v399 = vadd.f32 0.0, %v398
  %400 = vdwg.mxu0
  %v403 = vrot.slane %v399, 6
  %v404 = vsel %vm80, %v379, %v403
  %v406 = vadd.f32 %v357, %v404
  %v407 = vxor.u32 %v406, 2147483648
  %v408 = vmul.f32 %v407, 1.442695
  %v409 = vpow.pop %v408
  %v410 = vadd.f32 %v409, 1.0
  %v411 = vrcp.pop %v410
  %v412 = vmul.f32 %v410, %v411
  %v413 = vsub.f32 1.0, %v412
  %v414 = vmul.f32 %v411, %v413
  %v415 = vadd.f32 %v411, %v414
  %vm416 = vweird.f32 %v410
  %vm417 = vweird.f32 %v411
  %vm418 = vmor %vm416, %vm417
  %v419 = vsel %vm418, %v411, %v415
  %v420 = vand.u32 2147483647, %v410
  %vm421 = vcmp.eq.f32.partialorder %v420, 8.507059e+37
  %v422 = vand.u32 %v410, 2147483648
  %v423 = vor.u32 1.1754944e-38, %v422
  %v424 = vsel %vm421, %v423, %v419
  %v425 = vmul.f32 1.0, %v424
  %427 = vrot.lane.b32.xlu0 %v406, 64
  %v428 = vpop.permute.xlu0 %427
  %v429 = vrot.slane %v428, 2
  %v431 = vtanh.pop %v429
  %433 = vrot.lane.b32.xlu0 %v355, 64
  %v434 = vpop.permute.xlu0 %433
  %v436 = vmul.f32 %v425, %v434
  %v437 = vmul.f32 %v425, %v431
  %439 = vrot.lane.b32.xlu0 %v437, 64
  %v440 = vpop.permute.xlu0 %439
  %v442 = vadd.f32 %v436, %v440
  %v443 = vtanh.pop %v442
  %v445 = vrot.slane %v425, 2
  %448 = vrot.lane.b32.xlu0 %v443, 64
  %v449 = vpop.permute.xlu0 %448
  %v451 = vmul.f32 %v445, %v449
  %452 = vst.msk [vmem:[#allocation2] sm:$0x3] %vm11, %v451
  %454 = vst [vmem:[#allocation1] ss:$4 sm:$0xff] %v442
  %v455 = vld.sshfl [vmem:[#allocation1] sm:$0xff pattern:$0x73625140]
  %456 = vrot.lane.b32.xlu0 %v455, 64
  %v457 = vpop.permute.xlu0 %456
  %459 = vst.msk [vmem:[#allocation3] sm:$0x3] %vm11, %v457
  %s460 = scalar_lea.vmem %s2, 6
  %461 = vst.msk [vmem:[%s460] sm:$0x3] %vm11, %v451
  %v462 = vld [vmem:[#allocation2] sm:$0x3]
  %v463 = vld [vmem:[#allocation3] sm:$0x3]
  %s464 = scalar_lea.vmem %s0, 16
  %v465 = vld [vmem:[%s464] sm:$0xf]
  %v467 = vsel %vm33, %v462, 0
  %469 = vmatpush.msra.mxu0 0.0
  %470 = vmatpush.msra.mxu0 0.0
  %471 = vmatpush.msra.mxu0 0.0
  %472 = vmatpush.msra.mxu0 0.0
  %473 = vmatpush.msra.mxu0 0.0
  %474 = vmatpush.msra.mxu0 0.0
  %475 = vmatpush.msra.mxu0 0.0
  %476 = vmatpush.msra.mxu0 0.0
  %477 = vmatpush.msra.mxu0 %v28
  %478 = vmatpush.msra.mxu0 %v26
  %479 = vmatpush.msra.mxu0 %v24
  %480 = vmatpush.msra.mxu0 %v22
  %481 = vmatpush.msra.mxu0 %v20
  %482 = vmatpush.msra.mxu0 %v18
  %483 = vmatpush.msra.mxu0 %v16
  %484 = vmatpush.msra.mxu0 %v14
  %485 = vmatmul.f32.gmra.mxu0 %v467
  %v486 = vpop.f32.mrf.mxu0
  %v487 = vadd.f32 0.0, %v486
  %488 = vdwg.mxu0
  %489 = vmatpush.msra.mxu0 0.0
  %490 = vmatpush.msra.mxu0 0.0
  %491 = vmatpush.msra.mxu0 0.0
  %492 = vmatpush.msra.mxu0 0.0
  %493 = vmatpush.msra.mxu0 0.0
  %494 = vmatpush.msra.mxu0 0.0
  %495 = vmatpush.msra.mxu0 0.0
  %496 = vmatpush.msra.mxu0 0.0
  %497 = vmatpush.msra.mxu0 %v29
  %498 = vmatpush.msra.mxu0 %v27
  %499 = vmatpush.msra.mxu0 %v25
  %500 = vmatpush.msra.mxu0 %v23
  %501 = vmatpush.msra.mxu0 %v21
  %502 = vmatpush.msra.mxu0 %v19
  %503 = vmatpush.msra.mxu0 %v17
  %504 = vmatpush.msra.mxu0 %v15
  %505 = vmatmul.f32.gmra.mxu0 %v467
  %v506 = vpop.f32.mrf.mxu0
  %v507 = vadd.f32 0.0, %v506
  %508 = vdwg.mxu0
  %v511 = vrot.slane %v507, 6
  %v512 = vsel %vm80, %v487, %v511
  %v514 = vadd.f32 %v465, %v512
  %v515 = vxor.u32 %v514, 2147483648
  %v516 = vmul.f32 %v515, 1.442695
  %v517 = vpow.pop %v516
  %v518 = vadd.f32 %v517, 1.0
  %v519 = vrcp.pop %v518
  %v520 = vmul.f32 %v518, %v519
  %v521 = vsub.f32 1.0, %v520
  %v522 = vmul.f32 %v519, %v521
  %v523 = vadd.f32 %v519, %v522
  %vm524 = vweird.f32 %v518
  %vm525 = vweird.f32 %v519
  %vm526 = vmor %vm524, %vm525
  %v527 = vsel %vm526, %v519, %v523
  %v528 = vand.u32 2147483647, %v518
  %vm529 = vcmp.eq.f32.partialorder %v528, 8.507059e+37
  %v530 = vand.u32 %v518, 2147483648
  %v531 = vor.u32 1.1754944e-38, %v530
  %v532 = vsel %vm529, %v531, %v527
  %v533 = vmul.f32 1.0, %v532
  %535 = vrot.lane.b32.xlu0 %v514, 64
  %v536 = vpop.permute.xlu0 %535
  %v537 = vrot.slane %v536, 2
  %v539 = vtanh.pop %v537
  %541 = vrot.lane.b32.xlu0 %v463, 64
  %v542 = vpop.permute.xlu0 %541
  %v544 = vmul.f32 %v533, %v542
  %v545 = vmul.f32 %v533, %v539
  %547 = vrot.lane.b32.xlu0 %v545, 64
  %v548 = vpop.permute.xlu0 %547
  %v550 = vadd.f32 %v544, %v548
  %v551 = vtanh.pop %v550
  %v553 = vrot.slane %v533, 2
  %556 = vrot.lane.b32.xlu0 %v551, 64
  %v557 = vpop.permute.xlu0 %556
  %v559 = vmul.f32 %v553, %v557
  %560 = vst.msk [vmem:[#allocation2] sm:$0x3] %vm11, %v559
  %562 = vst [vmem:[#allocation1] ss:$4 sm:$0xff] %v550
  %v563 = vld.sshfl [vmem:[#allocation1] sm:$0xff pattern:$0x73625140]
  %564 = vrot.lane.b32.xlu0 %v563, 64
  %v565 = vpop.permute.xlu0 %564
  %567 = vst.msk [vmem:[#allocation3] sm:$0x3] %vm11, %v565
  %s568 = scalar_lea.vmem %s2, 8
  %569 = vst.msk [vmem:[%s568] sm:$0x3] %vm11, %v559
  %v570 = vld [vmem:[#allocation2] sm:$0x3]
  %v571 = vld [vmem:[#allocation3] sm:$0x3]
  %s572 = scalar_lea.vmem %s0, 20
  %v573 = vld [vmem:[%s572] sm:$0xf]
  %v575 = vsel %vm33, %v570, 0
  %577 = vmatpush.msra.mxu0 0.0
  %578 = vmatpush.msra.mxu0 0.0
  %579 = vmatpush.msra.mxu0 0.0
  %580 = vmatpush.msra.mxu0 0.0
  %581 = vmatpush.msra.mxu0 0.0
  %582 = vmatpush.msra.mxu0 0.0
  %583 = vmatpush.msra.mxu0 0.0
  %584 = vmatpush.msra.mxu0 0.0
  %585 = vmatpush.msra.mxu0 %v28
  %586 = vmatpush.msra.mxu0 %v26
  %587 = vmatpush.msra.mxu0 %v24
  %588 = vmatpush.msra.mxu0 %v22
  %589 = vmatpush.msra.mxu0 %v20
  %590 = vmatpush.msra.mxu0 %v18
  %591 = vmatpush.msra.mxu0 %v16
  %592 = vmatpush.msra.mxu0 %v14
  %593 = vmatmul.f32.gmra.mxu0 %v575
  %v594 = vpop.f32.mrf.mxu0
  %v595 = vadd.f32 0.0, %v594
  %596 = vdwg.mxu0
  %597 = vmatpush.msra.mxu0 0.0
  %598 = vmatpush.msra.mxu0 0.0
  %599 = vmatpush.msra.mxu0 0.0
  %600 = vmatpush.msra.mxu0 0.0
  %601 = vmatpush.msra.mxu0 0.0
  %602 = vmatpush.msra.mxu0 0.0
  %603 = vmatpush.msra.mxu0 0.0
  %604 = vmatpush.msra.mxu0 0.0
  %605 = vmatpush.msra.mxu0 %v29
  %606 = vmatpush.msra.mxu0 %v27
  %607 = vmatpush.msra.mxu0 %v25
  %608 = vmatpush.msra.mxu0 %v23
  %609 = vmatpush.msra.mxu0 %v21
  %610 = vmatpush.msra.mxu0 %v19
  %611 = vmatpush.msra.mxu0 %v17
  %612 = vmatpush.msra.mxu0 %v15
  %613 = vmatmul.f32.gmra.mxu0 %v575
  %v614 = vpop.f32.mrf.mxu0
  %v615 = vadd.f32 0.0, %v614
  %616 = vdwg.mxu0
  %v619 = vrot.slane %v615, 6
  %v620 = vsel %vm80, %v595, %v619
  %v622 = vadd.f32 %v573, %v620
  %v623 = vxor.u32 %v622, 2147483648
  %v624 = vmul.f32 %v623, 1.442695
  %v625 = vpow.pop %v624
  %v626 = vadd.f32 %v625, 1.0
  %v627 = vrcp.pop %v626
  %v628 = vmul.f32 %v626, %v627
  %v629 = vsub.f32 1.0, %v628
  %v630 = vmul.f32 %v627, %v629
  %v631 = vadd.f32 %v627, %v630
  %vm632 = vweird.f32 %v626
  %vm633 = vweird.f32 %v627
  %vm634 = vmor %vm632, %vm633
  %v635 = vsel %vm634, %v627, %v631
  %v636 = vand.u32 2147483647, %v626
  %vm637 = vcmp.eq.f32.partialorder %v636, 8.507059e+37
  %v638 = vand.u32 %v626, 2147483648
  %v639 = vor.u32 1.1754944e-38, %v638
  %v640 = vsel %vm637, %v639, %v635
  %v641 = vmul.f32 1.0, %v640
  %643 = vrot.lane.b32.xlu0 %v622, 64
  %v644 = vpop.permute.xlu0 %643
  %v645 = vrot.slane %v644, 2
  %v647 = vtanh.pop %v645
  %649 = vrot.lane.b32.xlu0 %v571, 64
  %v650 = vpop.permute.xlu0 %649
  %v652 = vmul.f32 %v641, %v650
  %v653 = vmul.f32 %v641, %v647
  %655 = vrot.lane.b32.xlu0 %v653, 64
  %v656 = vpop.permute.xlu0 %655
  %v658 = vadd.f32 %v652, %v656
  %v659 = vtanh.pop %v658
  %v661 = vrot.slane %v641, 2
  %664 = vrot.lane.b32.xlu0 %v659, 64
  %v665 = vpop.permute.xlu0 %664
  %v667 = vmul.f32 %v661, %v665
  %668 = vst.msk [vmem:[#allocation2] sm:$0x3] %vm11, %v667
  %670 = vst [vmem:[#allocation1] ss:$4 sm:$0xff] %v658
  %v671 = vld.sshfl [vmem:[#allocation1] sm:$0xff pattern:$0x73625140]
  %672 = vrot.lane.b32.xlu0 %v671, 64
  %v673 = vpop.permute.xlu0 %672
  %675 = vst.msk [vmem:[#allocation3] sm:$0x3] %vm11, %v673
  %s676 = scalar_lea.vmem %s2, 10
  %677 = vst.msk [vmem:[%s676] sm:$0x3] %vm11, %v667
  %v678 = vld [vmem:[#allocation2] sm:$0x3]
  %v679 = vld [vmem:[#allocation3] sm:$0x3]
  %s680 = scalar_lea.vmem %s0, 24
  %v681 = vld [vmem:[%s680] sm:$0xf]
  %v683 = vsel %vm33, %v678, 0
  %685 = vmatpush.msra.mxu0 0.0
  %686 = vmatpush.msra.mxu0 0.0
  %687 = vmatpush.msra.mxu0 0.0
  %688 = vmatpush.msra.mxu0 0.0
  %689 = vmatpush.msra.mxu0 0.0
  %690 = vmatpush.msra.mxu0 0.0
  %691 = vmatpush.msra.mxu0 0.0
  %692 = vmatpush.msra.mxu0 0.0
  %693 = vmatpush.msra.mxu0 %v28
  %694 = vmatpush.msra.mxu0 %v26
  %695 = vmatpush.msra.mxu0 %v24
  %696 = vmatpush.msra.mxu0 %v22
  %697 = vmatpush.msra.mxu0 %v20
  %698 = vmatpush.msra.mxu0 %v18
  %699 = vmatpush.msra.mxu0 %v16
  %700 = vmatpush.msra.mxu0 %v14
  %701 = vmatmul.f32.gmra.mxu0 %v683
  %v702 = vpop.f32.mrf.mxu0
  %v703 = vadd.f32 0.0, %v702
  %704 = vdwg.mxu0
  %705 = vmatpush.msra.mxu0 0.0
  %706 = vmatpush.msra.mxu0 0.0
  %707 = vmatpush.msra.mxu0 0.0
  %708 = vmatpush.msra.mxu0 0.0
  %709 = vmatpush.msra.mxu0 0.0
  %710 = vmatpush.msra.mxu0 0.0
  %711 = vmatpush.msra.mxu0 0.0
  %712 = vmatpush.msra.mxu0 0.0
  %713 = vmatpush.msra.mxu0 %v29
  %714 = vmatpush.msra.mxu0 %v27
  %715 = vmatpush.msra.mxu0 %v25
  %716 = vmatpush.msra.mxu0 %v23
  %717 = vmatpush.msra.mxu0 %v21
  %718 = vmatpush.msra.mxu0 %v19
  %719 = vmatpush.msra.mxu0 %v17
  %720 = vmatpush.msra.mxu0 %v15
  %721 = vmatmul.f32.gmra.mxu0 %v683
  %v722 = vpop.f32.mrf.mxu0
  %v723 = vadd.f32 0.0, %v722
  %724 = vdwg.mxu0
  %v727 = vrot.slane %v723, 6
  %v728 = vsel %vm80, %v703, %v727
  %v730 = vadd.f32 %v681, %v728
  %v731 = vxor.u32 %v730, 2147483648
  %v732 = vmul.f32 %v731, 1.442695
  %v733 = vpow.pop %v732
  %v734 = vadd.f32 %v733, 1.0
  %v735 = vrcp.pop %v734
  %v736 = vmul.f32 %v734, %v735
  %v737 = vsub.f32 1.0, %v736
  %v738 = vmul.f32 %v735, %v737
  %v739 = vadd.f32 %v735, %v738
  %vm740 = vweird.f32 %v734
  %vm741 = vweird.f32 %v735
  %vm742 = vmor %vm740, %vm741
  %v743 = vsel %vm742, %v735, %v739
  %v744 = vand.u32 2147483647, %v734
  %vm745 = vcmp.eq.f32.partialorder %v744, 8.507059e+37
  %v746 = vand.u32 %v734, 2147483648
  %v747 = vor.u32 1.1754944e-38, %v746
  %v748 = vsel %vm745, %v747, %v743
  %v749 = vmul.f32 1.0, %v748
  %751 = vrot.lane.b32.xlu0 %v730, 64
  %v752 = vpop.permute.xlu0 %751
  %v753 = vrot.slane %v752, 2
  %v755 = vtanh.pop %v753
  %757 = vrot.lane.b32.xlu0 %v679, 64
  %v758 = vpop.permute.xlu0 %757
  %v760 = vmul.f32 %v749, %v758
  %v761 = vmul.f32 %v749, %v755
  %763 = vrot.lane.b32.xlu0 %v761, 64
  %v764 = vpop.permute.xlu0 %763
  %v766 = vadd.f32 %v760, %v764
  %v767 = vtanh.pop %v766
  %v769 = vrot.slane %v749, 2
  %772 = vrot.lane.b32.xlu0 %v767, 64
  %v773 = vpop.permute.xlu0 %772
  %v775 = vmul.f32 %v769, %v773
  %776 = vst.msk [vmem:[#allocation2] sm:$0x3] %vm11, %v775
  %778 = vst [vmem:[#allocation1] ss:$4 sm:$0xff] %v766
  %v779 = vld.sshfl [vmem:[#allocation1] sm:$0xff pattern:$0x73625140]
  %780 = vrot.lane.b32.xlu0 %v779, 64
  %v781 = vpop.permute.xlu0 %780
  %783 = vst.msk [vmem:[#allocation3] sm:$0x3] %vm11, %v781
  %s784 = scalar_lea.vmem %s2, 12
  %785 = vst.msk [vmem:[%s784] sm:$0x3] %vm11, %v775
  %v786 = vld [vmem:[#allocation2] sm:$0x3]
  %v787 = vld [vmem:[#allocation3] sm:$0x3]
  %s788 = scalar_lea.vmem %s0, 28
  %v789 = vld [vmem:[%s788] sm:$0xf]
  %v791 = vsel %vm33, %v786, 0
  %793 = vmatpush.msra.mxu0 0.0
  %794 = vmatpush.msra.mxu0 0.0
  %795 = vmatpush.msra.mxu0 0.0
  %796 = vmatpush.msra.mxu0 0.0
  %797 = vmatpush.msra.mxu0 0.0
  %798 = vmatpush.msra.mxu0 0.0
  %799 = vmatpush.msra.mxu0 0.0
  %800 = vmatpush.msra.mxu0 0.0
  %801 = vmatpush.msra.mxu0 %v28
  %802 = vmatpush.msra.mxu0 %v26
  %803 = vmatpush.msra.mxu0 %v24
  %804 = vmatpush.msra.mxu0 %v22
  %805 = vmatpush.msra.mxu0 %v20
  %806 = vmatpush.msra.mxu0 %v18
  %807 = vmatpush.msra.mxu0 %v16
  %808 = vmatpush.msra.mxu0 %v14
  %809 = vmatmul.f32.gmra.mxu0 %v791
  %v810 = vpop.f32.mrf.mxu0
  %v811 = vadd.f32 0.0, %v810
  %812 = vdwg.mxu0
  %813 = vmatpush.msra.mxu0 0.0
  %814 = vmatpush.msra.mxu0 0.0
  %815 = vmatpush.msra.mxu0 0.0
  %816 = vmatpush.msra.mxu0 0.0
  %817 = vmatpush.msra.mxu0 0.0
  %818 = vmatpush.msra.mxu0 0.0
  %819 = vmatpush.msra.mxu0 0.0
  %820 = vmatpush.msra.mxu0 0.0
  %821 = vmatpush.msra.mxu0 %v29
  %822 = vmatpush.msra.mxu0 %v27
  %823 = vmatpush.msra.mxu0 %v25
  %824 = vmatpush.msra.mxu0 %v23
  %825 = vmatpush.msra.mxu0 %v21
  %826 = vmatpush.msra.mxu0 %v19
  %827 = vmatpush.msra.mxu0 %v17
  %828 = vmatpush.msra.mxu0 %v15
  %829 = vmatmul.f32.gmra.mxu0 %v791
  %v830 = vpop.f32.mrf.mxu0
  %v831 = vadd.f32 0.0, %v830
  %832 = vdwg.mxu0
  %v835 = vrot.slane %v831, 6
  %v836 = vsel %vm80, %v811, %v835
  %v838 = vadd.f32 %v789, %v836
  %v839 = vxor.u32 %v838, 2147483648
  %v840 = vmul.f32 %v839, 1.442695
  %v841 = vpow.pop %v840
  %v842 = vadd.f32 %v841, 1.0
  %v843 = vrcp.pop %v842
  %v844 = vmul.f32 %v842, %v843
  %v845 = vsub.f32 1.0, %v844
  %v846 = vmul.f32 %v843, %v845
  %v847 = vadd.f32 %v843, %v846
  %vm848 = vweird.f32 %v842
  %vm849 = vweird.f32 %v843
  %vm850 = vmor %vm848, %vm849
  %v851 = vsel %vm850, %v843, %v847
  %v852 = vand.u32 2147483647, %v842
  %vm853 = vcmp.eq.f32.partialorder %v852, 8.507059e+37
  %v854 = vand.u32 %v842, 2147483648
  %v855 = vor.u32 1.1754944e-38, %v854
  %v856 = vsel %vm853, %v855, %v851
  %v857 = vmul.f32 1.0, %v856
  %859 = vrot.lane.b32.xlu0 %v838, 64
  %v860 = vpop.permute.xlu0 %859
  %v861 = vrot.slane %v860, 2
  %v863 = vtanh.pop %v861
  %865 = vrot.lane.b32.xlu0 %v787, 64
  %v866 = vpop.permute.xlu0 %865
  %v868 = vmul.f32 %v857, %v866
  %v869 = vmul.f32 %v857, %v863
  %871 = vrot.lane.b32.xlu0 %v869, 64
  %v872 = vpop.permute.xlu0 %871
  %v874 = vadd.f32 %v868, %v872
  %v875 = vtanh.pop %v874
  %v877 = vrot.slane %v857, 2
  %880 = vrot.lane.b32.xlu0 %v875, 64
  %v881 = vpop.permute.xlu0 %880
  %v883 = vmul.f32 %v877, %v881
  %884 = vst.msk [vmem:[#allocation2] sm:$0x3] %vm11, %v883
  %886 = vst [vmem:[#allocation1] ss:$4 sm:$0xff] %v874
  %v887 = vld.sshfl [vmem:[#allocation1] sm:$0xff pattern:$0x73625140]
  %888 = vrot.lane.b32.xlu0 %v887, 64
  %v889 = vpop.permute.xlu0 %888
  %891 = vst.msk [vmem:[#allocation3] sm:$0x3] %vm11, %v889
  %s892 = scalar_lea.vmem %s2, 14
  %893 = vst.msk [vmem:[%s892] sm:$0x3] %vm11, %v883
  // Predicated region
  $region10: #{modeling_layer_forward.1} parent=0 // pred_check
    _
  $region11: #{modeling_layer_forward.1} parent=0 // pred_check_branch
    %895 = sbr.rel (0) target = $region13
  $region12: #{modeling_layer_forward.1} parent=0 // pred_region
    _
  $region13: #{modeling_layer_forward.1} parent=0 // pred_fallthru
    _
  // Predicated region
  $region14: #{modeling_layer_forward.1} parent=0 // pred_check
    _
  $region15: #{modeling_layer_forward.1} parent=0 // pred_check_branch
    %897 = sbr.rel (0) target = $region17
  $region16: #{modeling_layer_forward.1} parent=0 // pred_region
    _
  $region17: #{modeling_layer_forward.1} parent=0 // pred_fallthru
    _

</llo_original>
